<compile_context>
chip_gen: v6e
topology: v6e:2x2x1
jax: 0.10.0
libtpu: 0.0.40
codegen_flags: <defaults>
</compile_context>

<pallas_src>
import functools

import jax
import jax.numpy as jnp
from jax.experimental import pallas as pl
from jax.experimental.pallas import tpu as pltpu

_EPS = 1e-5
_SUBLANE = 8
_LANE = 128

# Per-array block target (~4 MiB): big enough to amortize the ~0.35us/grid-step
# overhead and approach the HBM roofline, small enough that double-buffered
# in+out plus f32 temporaries stay well under the scoped VMEM limit.
_TARGET_BLOCK_BYTES = 4 * 1024 * 1024
# Fused (full-spatial-block) path only when the minimum fused block keeps the
# double-buffered in+out footprint under this budget; otherwise spatial-tile.
_FUSED_PIPELINE_BUDGET = 24 * 1024 * 1024
# Raise the scoped VMEM limit (defaults 16/32 MiB); stay under v7x's 64 MiB.
_VMEM_LIMIT_BYTES = 48 * 1024 * 1024


def _round_up(x, m):
    return (x + m - 1) // m * m


# --------------------------- fused (small spatial) ---------------------------
def _adn_fused_kernel(alpha_ref, x_ref, o_ref, *, inv_count):
    # x_ref: (row_tile, spatial) tile; alpha_ref: (1,) PReLU slope in SMEM.
    x = x_ref[...]
    if x.dtype != jnp.float32:
        x = x.astype(jnp.float32)
    # Single sweep: mean and E[x^2] together (var = E[x^2] - mean^2).
    row_sum = jnp.sum(x, axis=-1, keepdims=True)
    row_ssq = jnp.sum(x * x, axis=-1, keepdims=True)
    mean = row_sum * inv_count
    var = jnp.maximum(row_ssq * inv_count - mean * mean, 0.0)
    rstd = jax.lax.rsqrt(var + _EPS)
    xn = (x - mean) * rstd
    # Dropout(p=0.0) is the identity.
    # TODO(synk): dropout_prob > 0 would need pltpu.prng_seed + stateful_bernoulli.
    a = alpha_ref[0].astype(jnp.float32)
    y = jnp.where(xn >= 0, xn, a * xn)
    o_ref[...] = y.astype(o_ref.dtype)


# ----------------------- tiled two-pass (large spatial) ----------------------
def _adn_stats_kernel(x_ref, mean_ref, rstd_ref, sum_ref, ssq_ref, *, inv_count):
    # Accumulate per-row sum / sum-of-squares over the spatial ("arbitrary") axis.
    k = pl.program_id(1)

    @pl.when(k == 0)
    def _():
        sum_ref[...] = jnp.zeros_like(sum_ref)
        ssq_ref[...] = jnp.zeros_like(ssq_ref)

    x = x_ref[...]
    if x.dtype != jnp.float32:
        x = x.astype(jnp.float32)
    sum_ref[...] += jnp.sum(x, axis=-1, keepdims=True)
    ssq_ref[...] += jnp.sum(x * x, axis=-1, keepdims=True)

    @pl.when(k == pl.num_programs(1) - 1)
    def _():
        mean = sum_ref[...] * inv_count          # zero-padding adds 0 to sums;
        var = jnp.maximum(ssq_ref[...] * inv_count - mean * mean, 0.0)  # divide by true count
        mean_ref[...] = mean
        rstd_ref[...] = jax.lax.rsqrt(var + _EPS)


def _adn_apply_kernel(alpha_ref, x_ref, mean_ref, rstd_ref, o_ref):
    x = x_ref[...]
    if x.dtype != jnp.float32:
        x = x.astype(jnp.float32)
    xn = (x - mean_ref[...]) * rstd_ref[...]
    a = alpha_ref[0].astype(jnp.float32)
    y = jnp.where(xn >= 0, xn, a * xn)
    o_ref[...] = y.astype(o_ref.dtype)


# --------------------------------- wrapper -----------------------------------
def _choose_row_tile(rows, row_bytes):
    rows8 = _round_up(rows, _SUBLANE)
    row_tile = max(
        _SUBLANE,
        (_TARGET_BLOCK_BYTES // max(row_bytes, 1)) // _SUBLANE * _SUBLANE,
    )
    if rows8 >= 2 * _SUBLANE:
        # Keep >= 2 row-grid steps so v7x's second TensorCore gets work.
        half = max(_SUBLANE, (rows8 // 2) // _SUBLANE * _SUBLANE)
        row_tile = min(row_tile, half)
    return min(row_tile, rows8)


@functools.partial(jax.jit, static_argnames=("force_tiled", "spatial_tile"))
def adn_forward(x, prelu_weight, *, force_tiled=False, spatial_tile=None):
    """ADN forward. x: (N, C, D, H, W); prelu_weight: (1,) shared PReLU slope."""
    n, c, d, h, w = x.shape
    rows = n * c
    spatial = d * h * w
    itemsize = jnp.dtype(x.dtype).itemsize
    row_bytes = spatial * itemsize
    inv_count = 1.0 / float(spatial)

    x2d = x.reshape(rows, spatial)

    use_fused = (not force_tiled) and (
        4 * _SUBLANE * row_bytes <= _FUSED_PIPELINE_BUDGET
    )

    if use_fused:
        row_tile = _choose_row_tile(rows, row_bytes)
        padded_rows = _round_up(rows, row_tile)
        if padded_rows != rows:
            x2d = jnp.pad(x2d, ((0, padded_rows - rows), (0, 0)))

        out2d = pl.pallas_call(
            functools.partial(_adn_fused_kernel, inv_count=inv_count),
            out_shape=jax.ShapeDtypeStruct((padded_rows, spatial), x.dtype),
            grid_spec=pltpu.PrefetchScalarGridSpec(
                num_scalar_prefetch=0,
                grid=(padded_rows // row_tile,),
                in_specs=[
                    pl.BlockSpec(memory_space=pltpu.SMEM),             # alpha
                    pl.BlockSpec((row_tile, spatial), lambda i: (i, 0)),
                ],
                out_specs=pl.BlockSpec((row_tile, spatial), lambda i: (i, 0)),
            ),
            compiler_params=pltpu.CompilerParams(
                dimension_semantics=("parallel",),
                vmem_limit_bytes=_VMEM_LIMIT_BYTES,
            ),
        )(prelu_weight, x2d)

        return out2d[:rows].reshape(n, c, d, h, w)

    # ---------------- spatially tiled two-pass path (large D*H*W) ----------------
    # Spatial tile first (lane-dense, multiple of 128), then grow the row tile so
    # each block is ~_TARGET_BLOCK_BYTES even when the spatial tile is small.
    if spatial_tile is None:
        st = (_TARGET_BLOCK_BYTES // (_SUBLANE * itemsize)) // _LANE * _LANE
        st = max(st, 4 * _LANE)
    else:
        st = _round_up(int(spatial_tile), _LANE)
    st = min(st, _round_up(spatial, _LANE))

    row_tile = (_TARGET_BLOCK_BYTES // max(st * itemsize, 1)) // _SUBLANE * _SUBLANE
    row_tile = max(_SUBLANE, min(row_tile, _round_up(rows, _SUBLANE)))

    padded_rows = _round_up(rows, row_tile)
    padded_spatial = _round_up(spatial, st)

    pad_r = padded_rows - rows
    pad_s = padded_spatial - spatial
    if pad_r or pad_s:
        x2d = jnp.pad(x2d, ((0, pad_r), (0, pad_s)))

    grid = (padded_rows // row_tile, padded_spatial // st)

    mean, rstd = pl.pallas_call(
        functools.partial(_adn_stats_kernel, inv_count=inv_count),
        out_shape=(
            jax.ShapeDtypeStruct((padded_rows, 1), jnp.float32),
            jax.ShapeDtypeStruct((padded_rows, 1), jnp.float32),
        ),
        grid_spec=pltpu.PrefetchScalarGridSpec(
            num_scalar_prefetch=0,
            grid=grid,
            in_specs=[pl.BlockSpec((row_tile, st), lambda i, k: (i, k))],
            out_specs=(
                pl.BlockSpec((row_tile, 1), lambda i, k: (i, 0)),
                pl.BlockSpec((row_tile, 1), lambda i, k: (i, 0)),
            ),
            scratch_shapes=[
                pltpu.VMEM((row_tile, 1), jnp.float32),
                pltpu.VMEM((row_tile, 1), jnp.float32),
            ],
        ),
        compiler_params=pltpu.CompilerParams(
            dimension_semantics=("parallel", "arbitrary"),
            vmem_limit_bytes=_VMEM_LIMIT_BYTES,
        ),
    )(x2d)

    out2d = pl.pallas_call(
        _adn_apply_kernel,
        out_shape=jax.ShapeDtypeStruct((padded_rows, padded_spatial), x.dtype),
        grid_spec=pltpu.PrefetchScalarGridSpec(
            num_scalar_prefetch=0,
            grid=grid,
            in_specs=[
                pl.BlockSpec(memory_space=pltpu.SMEM),                  # alpha
                pl.BlockSpec((row_tile, st), lambda i, k: (i, k)),
                pl.BlockSpec((row_tile, 1), lambda i, k: (i, 0)),
                pl.BlockSpec((row_tile, 1), lambda i, k: (i, 0)),
            ],
            out_specs=pl.BlockSpec((row_tile, st), lambda i, k: (i, k)),
        ),
        compiler_params=pltpu.CompilerParams(
            dimension_semantics=("parallel", "parallel"),
            vmem_limit_bytes=_VMEM_LIMIT_BYTES,
        ),
    )(prelu_weight, x2d, mean, rstd)

    return out2d[:rows, :spatial].reshape(n, c, d, h, w)


def adn_reference(x, prelu_weight):
    """Plain-JAX reference matching PyTorch semantics."""
    mean = jnp.mean(x, axis=(2, 3, 4), keepdims=True)
    var = jnp.mean((x - mean) ** 2, axis=(2, 3, 4), keepdims=True)
    xn = (x - mean) / jnp.sqrt(var + _EPS)
    a = prelu_weight[0]
    return jnp.where(xn >= 0, xn, a * xn)


if __name__ == "__main__":
    key = jax.random.PRNGKey(0)
    k1, k2, k3 = jax.random.split(key, 3)
    prelu_weight = jnp.array([0.25], dtype=jnp.float32)  # PReLU default slope

    # Case 1: small volume -> fused full-spatial-block path.
    x1 = jax.random.normal(k1, (2, 4, 4, 8, 8), dtype=jnp.float32)
    o1 = jax.block_until_ready(adn_forward(x1, prelu_weight))
    r1 = adn_reference(x1, prelu_weight)
    assert o1.shape == x1.shape
    assert jnp.allclose(o1, r1, atol=1e-4, rtol=1e-4), "fused path mismatch"

    # Case 2: exercise the spatially-tiled two-pass path (used for large D*H*W).
    x2 = jax.random.normal(k2, (2, 4, 4, 8, 128), dtype=jnp.float32)
    o2 = jax.block_until_ready(
        adn_forward(x2, prelu_weight, force_tiled=True, spatial_tile=512)
    )
    r2 = adn_reference(x2, prelu_weight)
    assert jnp.allclose(o2, r2, atol=1e-4, rtol=1e-4), "tiled path mismatch"

    # Case 3: N*C not a multiple of the sublane tile -> padded-rows path.
    x3 = jax.random.normal(k3, (1, 3, 4, 8, 8), dtype=jnp.float32)
    o3 = jax.block_until_ready(adn_forward(x3, prelu_weight))
    r3 = adn_reference(x3, prelu_weight)
    assert jnp.allclose(o3, r3, atol=1e-4, rtol=1e-4), "padded-rows mismatch"

    print("KERNEL_OK")
</pallas_src>

<mosaic_0001>
module attributes {stable_mosaic.version = 11 : i64} {
  func.func @_adn_fused_kernel(%arg0: i32, %arg1: memref<1xf32, #tpu.memory_space<smem>>, %arg2: memref<8x256xf32, #tpu.memory_space<vmem>>, %arg3: memref<8x256xf32, #tpu.memory_space<vmem>>) attributes {dimension_semantics = [#tpu.dimension_semantics<parallel>], iteration_bounds = array<i64: 1>, scalar_prefetch = 0 : i64, scratch_operands = 0 : i64, tpu.core_type = #tpu.core_type<tc>, window_params = [{transform_indices = @transform_0, window_bounds = array<i64: 1>}, {transform_indices = @transform_1, window_bounds = array<i64: 8, 256>}, {transform_indices = @transform_2, window_bounds = array<i64: 8, 256>}]} {
    %c0 = arith.constant 0 : index
    %c0_0 = arith.constant 0 : index
    %0 = vector.load %arg2[%c0, %c0_0] : memref<8x256xf32, #tpu.memory_space<vmem>>, vector<8x256xf32>
    %cst = arith.constant dense<0.000000e+00> : vector<8xf32>
    %1 = vector.multi_reduction <add>, %0, %cst [1] : vector<8x256xf32> to vector<8xf32>
    %2 = vector.shape_cast %1 : vector<8xf32> to vector<8x1xf32>
    %3 = arith.mulf %0, %0 : vector<8x256xf32>
    %cst_1 = arith.constant dense<0.000000e+00> : vector<8xf32>
    %4 = vector.multi_reduction <add>, %3, %cst_1 [1] : vector<8x256xf32> to vector<8xf32>
    %5 = vector.shape_cast %4 : vector<8xf32> to vector<8x1xf32>
    %cst_2 = arith.constant 3.906250e-03 : f32
    %6 = vector.broadcast %cst_2 : f32 to vector<8x1xf32>
    %7 = arith.mulf %2, %6 : vector<8x1xf32>
    %cst_3 = arith.constant 3.906250e-03 : f32
    %8 = vector.broadcast %cst_3 : f32 to vector<8x1xf32>
    %9 = arith.mulf %5, %8 : vector<8x1xf32>
    %10 = arith.mulf %7, %7 : vector<8x1xf32>
    %11 = arith.subf %9, %10 : vector<8x1xf32>
    %cst_4 = arith.constant 0.000000e+00 : f32
    %12 = vector.broadcast %cst_4 : f32 to vector<8x1xf32>
    %13 = arith.maximumf %11, %12 : vector<8x1xf32>
    %cst_5 = arith.constant 9.99999974E-6 : f32
    %14 = vector.broadcast %cst_5 : f32 to vector<8x1xf32>
    %15 = arith.addf %13, %14 : vector<8x1xf32>
    %16 = math.rsqrt %15 : vector<8x1xf32>
    %17 = vector.broadcast %7 : vector<8x1xf32> to vector<8x256xf32>
    %18 = arith.subf %0, %17 : vector<8x256xf32>
    %19 = vector.broadcast %16 : vector<8x1xf32> to vector<8x256xf32>
    %20 = arith.mulf %18, %19 : vector<8x256xf32>
    %c0_6 = arith.constant 0 : index
    %21 = memref.load %arg1[%c0_6] : memref<1xf32, #tpu.memory_space<smem>>
    %cst_7 = arith.constant 0.000000e+00 : f32
    %22 = vector.broadcast %cst_7 : f32 to vector<8x256xf32>
    %23 = arith.cmpf oge, %20, %22 : vector<8x256xf32>
    %24 = vector.broadcast %21 : f32 to vector<8x256xf32>
    %25 = arith.mulf %24, %20 : vector<8x256xf32>
    %26 = arith.select %23, %20, %25 : vector<8x256xi1>, vector<8x256xf32>
    %c0_8 = arith.constant 0 : index
    %c0_9 = arith.constant 0 : index
    %27 = vector.load %arg3[%c0_8, %c0_9] : memref<8x256xf32, #tpu.memory_space<vmem>>, vector<8x256xf32>
    tpu.vector_store %arg3[%c0_8, %c0_9], %26 {strides = array<i32>} : memref<8x256xf32, #tpu.memory_space<vmem>>, vector<8x256xf32>,
    return
  }
  func.func @transform_0(%arg0: i32) -> i32 {
    %c0_i32 = arith.constant 0 : i32
    %c0_i32_0 = arith.constant 0 : i32
    return %c0_i32 : i32
  }
  func.func @transform_1(%arg0: i32) -> (i32, i32) {
    %c0_i32 = arith.constant 0 : i32
    %c0_i32_0 = arith.constant 0 : i32
    return %arg0, %c0_i32 : i32, i32
  }
  func.func @transform_2(%arg0: i32) -> (i32, i32) {
    %c0_i32 = arith.constant 0 : i32
    %c0_i32_0 = arith.constant 0 : i32
    return %arg0, %c0_i32 : i32, i32
  }
}

</mosaic_0001>

<llo_original>
// kernel: adn_forward.1
$region0: #{adn_forward.1}
  #allocation0 [shape = 'u32[]', space=smem, size = 0x4, offset = 0x4, fixed_abs, tag = 'smem constant byte address 0x4 - core index']
  #allocation1 [shape = 'u32[144,128]{1,0:T(1,128)}', space=vmem, size = 0x12000, scoped, tag = 'internal scratch']
  #allocation2 [shape = 'f32[1]{0:T(128)S(6)}', space=smem, size = 0x200, scoped, tag = 'scoped memory for adn_forward.1']
  %s0 = inlined_call_operand.<no memory space> [shape: f32[1], index: 0, kind: input, shape index: {}]
  %s1 = inlined_call_operand.vmem [shape: f32[8,256], index: 1, kind: input, shape index: {}]
  %s2 = inlined_call_operand.vmem [shape: f32[8,256], index: 2, kind: output, shape index: {}]
  %s3 = sld [smem:[#allocation0]]
  $region18: #{adn_forward.1} parent=0
    _
  %s5 = ssub.s32 1, %s3
  %s6 = scalar_select 0, %s5, %s3
  %7 = sst [smem:[#allocation2]] %s0
  // Predicated region
  $region2: #{adn_forward.1} parent=0 // pred_check
    _
  $region3: #{adn_forward.1} parent=0 // pred_check_branch
    %9 = sbr.rel (0) target = $region5
  $region4: #{adn_forward.1} parent=0 // pred_region
    _
  $region5: #{adn_forward.1} parent=0 // pred_fallthru
    _
  // Predicated region
  $region6: #{adn_forward.1} parent=0 // pred_check
    _
  $region7: #{adn_forward.1} parent=0 // pred_check_branch
    %11 = sbr.rel (0) target = $region9
  $region8: #{adn_forward.1} parent=0 // pred_region
    _
  $region9: #{adn_forward.1} parent=0 // pred_fallthru
    _
  %v12 = vld [vmem:[%s1] sm:$0xff]
  %v13 = vld [vmem:[%s1 + $0x8] sm:$0xff]
  %v14 = vadd.f32 %v12, %v13
  %15 = vadd.xlane.f32.xlu0 %v14
  %v16 = vpop.xlane.xlu0 %15
  %v17 = vmul.f32 %v12, %v12
  %v18 = vmul.f32 %v13, %v13
  %v19 = vadd.f32 %v17, %v18
  %20 = vadd.xlane.f32.xlu0 %v19
  %v21 = vpop.xlane.xlu0 %20
  %v22 = vmul.f32 %v16, 0.00390625
  %v23 = vmul.f32 %v21, 0.00390625
  %v24 = vmul.f32 %v22, %v22
  %v25 = vsub.f32 %v23, %v24
  %v26 = vmax.f32 %v25, 0.0
  %v27 = vadd.f32 %v26, 1e-05
  %v28 = vrsqrt.pop %v27
  %v29 = vsub.f32 %v12, %v22
  %v30 = vsub.f32 %v13, %v22
  %v31 = vmul.f32 %v29, %v28
  %v32 = vmul.f32 %v30, %v28
  %s33 = sld [smem:[#allocation2]]
  %vm34 = vcmp.ge.f32.partialorder %v31, 0.0
  %vm35 = vcmp.ge.f32.partialorder %v32, 0.0
  %v36 = vstv %s33
  %v37 = vmul.f32 %v36, %v31
  %v38 = vmul.f32 %v36, %v32
  %v39 = vsel %vm34, %v31, %v37
  %v40 = vsel %vm35, %v32, %v38
  %41 = vst [vmem:[%s2] sm:$0xff] %v39
  %42 = vst [vmem:[%s2 + $0x8] sm:$0xff] %v40
  // Predicated region
  $region10: #{adn_forward.1} parent=0 // pred_check
    _
  $region11: #{adn_forward.1} parent=0 // pred_check_branch
    %44 = sbr.rel (0) target = $region13
  $region12: #{adn_forward.1} parent=0 // pred_region
    _
  $region13: #{adn_forward.1} parent=0 // pred_fallthru
    _
  // Predicated region
  $region14: #{adn_forward.1} parent=0 // pred_check
    _
  $region15: #{adn_forward.1} parent=0 // pred_check_branch
    %46 = sbr.rel (0) target = $region17
  $region16: #{adn_forward.1} parent=0 // pred_region
    _
  $region17: #{adn_forward.1} parent=0 // pred_fallthru
    _

</llo_original>
